<compile_context>
chip_gen: v5e
topology: v5e:2x2
jax: 0.10.0
libtpu: 0.0.40
codegen_flags: <defaults>
</compile_context>

<pallas_src>
import functools

import jax
import jax.numpy as jnp
from jax.experimental import pallas as pl
from jax.experimental.pallas import tpu as pltpu

# ---- BitQuant configuration (matches QModel defaults) ----------------------
QUANT_SCALE = 0.25          # quantscale
CAL_W_SCALE = 1.0           # calibrated_weight_scale default (no calibration)
W_SCALE = QUANT_SCALE * 8.0 / CAL_W_SCALE   # '4bitsym' weight scale == 2.0
INV_W_SCALE = 1.0 / W_SCALE                 # == 0.5 (compile-time constant)


def weight_quant_4bitsym_codes(w, scale=W_SCALE):
    """BitQuant.weight_quant ('4bitsym'), integer-code form.

    PyTorch stores `clip(round(w*scale-0.5), -8, 7) + 0.5`; we keep only the
    integer part (fits int8/int4) and re-apply both +0.5 offsets (quantize's
    and forward-dequant's) inside the kernel as `(code + 1.0) * inv_scale`.
    """
    return jnp.clip(jnp.round(w * scale - 0.5), -8.0, 7.0), scale


# ---- Pallas kernel: QModel.forward hot path ---------------------------------
def qmlp_kernel(x_ref, w1q_ref, b1q_ref, w2q_ref, b2q_ref, o_ref, *, inv_scale):
    # Forward-time dequant (BitQuant.dequantize_tensor '4bitsym'):
    #   dq = (stored_code + 0.5) / scale, stored_code = int_code + 0.5
    #      = (int_code + 1.0) * inv_scale
    # Dequantized values are exact half-steps in [-3.5, 4.0] -> bf16-lossless.
    w1 = ((w1q_ref[...].astype(jnp.float32) + 1.0) * inv_scale).astype(jnp.bfloat16)
    w2 = ((w2q_ref[...].astype(jnp.float32) + 1.0) * inv_scale).astype(jnp.bfloat16)
    b1 = (b1q_ref[...] + 1.0) * inv_scale          # stays f32 (added post-MXU)
    b2 = (b2q_ref[...] + 1.0) * inv_scale

    x = x_ref[...].astype(jnp.bfloat16)            # bf16 MXU operands, f32 accum
    h = jnp.dot(x, w1, preferred_element_type=jnp.float32) + b1
    h = jnp.maximum(h, 0.0)                        # ReLU of the wrapped model
    out = jnp.dot(h.astype(jnp.bfloat16), w2,
                  preferred_element_type=jnp.float32) + b2
    o_ref[...] = out.astype(o_ref.dtype)


def qmodel_forward(x, w1_q, b1_q, w2_q, b2_q,
                   inv_scale=INV_W_SCALE, block_b=8):
    """Dequantize->MLP forward, batch-tiled, weights resident in VMEM."""
    B, D_in = x.shape
    H = w1_q.shape[1]
    D_out = w2_q.shape[1]
    assert B % block_b == 0, "batch must be a multiple of the batch tile"

    kernel = functools.partial(qmlp_kernel, inv_scale=inv_scale)

    flops = 2 * B * (D_in * H + H * D_out)
    bytes_accessed = (x.size * x.dtype.itemsize
                      + w1_q.size * w1_q.dtype.itemsize
                      + b1_q.size * b1_q.dtype.itemsize
                      + w2_q.size * w2_q.dtype.itemsize
                      + b2_q.size * b2_q.dtype.itemsize
                      + B * D_out * 4)

    return pl.pallas_call(
        kernel,
        out_shape=jax.ShapeDtypeStruct((B, D_out), jnp.float32),
        grid=(B // block_b,),
        in_specs=[
            # activations: pipelined over batch tiles
            pl.BlockSpec((block_b, D_in), lambda i: (i, 0)),
            # params: same block every step -> stay resident in VMEM
            pl.BlockSpec((D_in, H), lambda i: (0, 0)),
            pl.BlockSpec((1, H), lambda i: (0, 0)),
            pl.BlockSpec((H, D_out), lambda i: (0, 0)),
            pl.BlockSpec((1, D_out), lambda i: (0, 0)),
        ],
        out_specs=pl.BlockSpec((block_b, D_out), lambda i: (i, 0)),
        compiler_params=pltpu.CompilerParams(
            dimension_semantics=("parallel",)),     # 2x on v7x dual-TC
        cost_estimate=pl.CostEstimate(
            flops=flops, transcendentals=0, bytes_accessed=bytes_accessed),
    )(x, w1_q, b1_q, w2_q, b2_q)


# ---- Pure-JAX references (correctness checks) -------------------------------
def reference_forward_bf16(x, w1_q, b1_q, w2_q, b2_q, inv_scale=INV_W_SCALE):
    """Mimics kernel numerics exactly (bf16 MXU operands, f32 accumulate)."""
    w1 = ((w1_q.astype(jnp.float32) + 1.0) * inv_scale).astype(jnp.bfloat16)
    w2 = ((w2_q.astype(jnp.float32) + 1.0) * inv_scale).astype(jnp.bfloat16)
    b1 = (b1_q + 1.0) * inv_scale
    b2 = (b2_q + 1.0) * inv_scale
    h = jnp.dot(x.astype(jnp.bfloat16), w1,
                preferred_element_type=jnp.float32) + b1
    h = jnp.maximum(h, 0.0)
    return jnp.dot(h.astype(jnp.bfloat16), w2,
                   preferred_element_type=jnp.float32) + b2


def reference_forward_f32(x, w1_q, b1_q, w2_q, b2_q, inv_scale=INV_W_SCALE):
    """PyTorch QModel.forward semantics in full f32 (semantic sanity check)."""
    w1 = (w1_q.astype(jnp.float32) + 1.0) * inv_scale
    w2 = (w2_q.astype(jnp.float32) + 1.0) * inv_scale
    b1 = (b1_q + 1.0) * inv_scale
    b2 = (b2_q + 1.0) * inv_scale
    h = jnp.maximum(x @ w1 + b1, 0.0)
    return h @ w2 + b2


if __name__ == "__main__":
    B, D_IN, HIDDEN, D_OUT = 16, 32, 64, 16   # Linear(32,64) -> ReLU -> Linear(64,16)

    key = jax.random.PRNGKey(0)
    kx, kw1, kb1, kw2, kb2 = jax.random.split(key, 5)

    # Deterministic "checkpoint": original float weights of the wrapped MLP.
    x = jax.random.normal(kx, (B, D_IN), dtype=jnp.float32)
    w1 = jax.random.normal(kw1, (HIDDEN, D_IN), dtype=jnp.float32) * 0.2   # nn.Linear(32,64).weight
    b1 = jax.random.normal(kb1, (HIDDEN,), dtype=jnp.float32) * 0.2        # nn.Linear(32,64).bias
    w2 = jax.random.normal(kw2, (D_OUT, HIDDEN), dtype=jnp.float32) * 0.2  # nn.Linear(64,16).weight
    b2 = jax.random.normal(kb2, (D_OUT,), dtype=jnp.float32) * 0.2         # nn.Linear(64,16).bias

    # QModel.quantize(): 4bitsym codes for every weight/bias.
    # Weights transposed to (D_in, D_out) and stored as int8; biases as f32
    # codes (tiny, kept f32 to sidestep sub-32-bit layout constraints on (1,N)).
    w1_q, _ = weight_quant_4bitsym_codes(w1.T)            # (D_IN, HIDDEN)
    b1_q, _ = weight_quant_4bitsym_codes(b1[None, :])     # (1, HIDDEN)
    w2_q, _ = weight_quant_4bitsym_codes(w2.T)            # (HIDDEN, D_OUT)
    b2_q, _ = weight_quant_4bitsym_codes(b2[None, :])     # (1, D_OUT)
    w1_q = w1_q.astype(jnp.int8)
    w2_q = w2_q.astype(jnp.int8)

    # QModel.forward(x): dequantize params in-kernel and run the wrapped model.
    out = qmodel_forward(x, w1_q, b1_q, w2_q, b2_q)
    out = jax.block_until_ready(out)
    assert out.shape == (B, D_OUT)

    # Bit-level check vs. a reference with identical bf16/f32 numerics.
    ref_bf16 = reference_forward_bf16(x, w1_q, b1_q, w2_q, b2_q)
    assert jnp.allclose(out, ref_bf16, atol=1e-2, rtol=1e-2)

    # Semantic check vs. the full-f32 PyTorch-equivalent forward
    # (bf16 activation rounding introduces a small, bounded error).
    ref_f32 = reference_forward_f32(x, w1_q, b1_q, w2_q, b2_q)
    assert jnp.allclose(out, ref_f32, atol=3.0, rtol=1e-1)

    print("KERNEL_OK")
</pallas_src>

<mosaic_0001>
module attributes {stable_mosaic.version = 11 : i64} {
  func.func @qmlp_kernel(%arg0: i32, %arg1: memref<8x32xf32, #tpu.memory_space<vmem>>, %arg2: memref<32x64xi8, #tpu.memory_space<vmem>>, %arg3: memref<1x64xf32, #tpu.memory_space<vmem>>, %arg4: memref<64x16xi8, #tpu.memory_space<vmem>>, %arg5: memref<1x16xf32, #tpu.memory_space<vmem>>, %arg6: memref<8x16xf32, #tpu.memory_space<vmem>>) attributes {dimension_semantics = [#tpu.dimension_semantics<parallel>], iteration_bounds = array<i64: 2>, scalar_prefetch = 0 : i64, scratch_operands = 0 : i64, tpu.core_type = #tpu.core_type<tc>, window_params = [{transform_indices = @transform_0, window_bounds = array<i64: 8, 32>}, {pipeline_mode = #tpu.pipeline_mode<synchronous>, transform_indices = @transform_1, window_bounds = array<i64: 32, 64>}, {pipeline_mode = #tpu.pipeline_mode<synchronous>, transform_indices = @transform_2, window_bounds = array<i64: 1, 64>}, {pipeline_mode = #tpu.pipeline_mode<synchronous>, transform_indices = @transform_3, window_bounds = array<i64: 64, 16>}, {pipeline_mode = #tpu.pipeline_mode<synchronous>, transform_indices = @transform_4, window_bounds = array<i64: 1, 16>}, {transform_indices = @transform_5, window_bounds = array<i64: 8, 16>}]} {
    %c0 = arith.constant 0 : index
    %c0_0 = arith.constant 0 : index
    %0 = vector.load %arg2[%c0, %c0_0] : memref<32x64xi8, #tpu.memory_space<vmem>>, vector<32x64xi8>
    %1 = arith.sitofp %0 : vector<32x64xi8> to vector<32x64xf32>
    %cst = arith.constant 1.000000e+00 : f32
    %2 = vector.broadcast %cst : f32 to vector<32x64xf32>
    %3 = arith.addf %1, %2 : vector<32x64xf32>
    %cst_1 = arith.constant 5.000000e-01 : f32
    %4 = vector.broadcast %cst_1 : f32 to vector<32x64xf32>
    %5 = arith.mulf %3, %4 : vector<32x64xf32>
    %6 = arith.truncf %5 : vector<32x64xf32> to vector<32x64xbf16>
    %c0_2 = arith.constant 0 : index
    %c0_3 = arith.constant 0 : index
    %7 = vector.load %arg4[%c0_2, %c0_3] : memref<64x16xi8, #tpu.memory_space<vmem>>, vector<64x16xi8>
    %8 = arith.sitofp %7 : vector<64x16xi8> to vector<64x16xf32>
    %cst_4 = arith.constant 1.000000e+00 : f32
    %9 = vector.broadcast %cst_4 : f32 to vector<64x16xf32>
    %10 = arith.addf %8, %9 : vector<64x16xf32>
    %cst_5 = arith.constant 5.000000e-01 : f32
    %11 = vector.broadcast %cst_5 : f32 to vector<64x16xf32>
    %12 = arith.mulf %10, %11 : vector<64x16xf32>
    %13 = arith.truncf %12 : vector<64x16xf32> to vector<64x16xbf16>
    %c0_6 = arith.constant 0 : index
    %c0_7 = arith.constant 0 : index
    %14 = vector.load %arg3[%c0_6, %c0_7] : memref<1x64xf32, #tpu.memory_space<vmem>>, vector<1x64xf32>
    %cst_8 = arith.constant 1.000000e+00 : f32
    %15 = vector.broadcast %cst_8 : f32 to vector<1x64xf32>
    %16 = arith.addf %14, %15 : vector<1x64xf32>
    %cst_9 = arith.constant 5.000000e-01 : f32
    %17 = vector.broadcast %cst_9 : f32 to vector<1x64xf32>
    %18 = arith.mulf %16, %17 : vector<1x64xf32>
    %c0_10 = arith.constant 0 : index
    %c0_11 = arith.constant 0 : index
    %19 = vector.load %arg5[%c0_10, %c0_11] : memref<1x16xf32, #tpu.memory_space<vmem>>, vector<1x16xf32>
    %cst_12 = arith.constant 1.000000e+00 : f32
    %20 = vector.broadcast %cst_12 : f32 to vector<1x16xf32>
    %21 = arith.addf %19, %20 : vector<1x16xf32>
    %cst_13 = arith.constant 5.000000e-01 : f32
    %22 = vector.broadcast %cst_13 : f32 to vector<1x16xf32>
    %23 = arith.mulf %21, %22 : vector<1x16xf32>
    %c0_14 = arith.constant 0 : index
    %c0_15 = arith.constant 0 : index
    %24 = vector.load %arg1[%c0_14, %c0_15] : memref<8x32xf32, #tpu.memory_space<vmem>>, vector<8x32xf32>
    %25 = arith.truncf %24 : vector<8x32xf32> to vector<8x32xbf16>
    %cst_16 = arith.constant dense<0.000000e+00> : vector<8x64xf32>
    %26 = tpu.matmul %25, %6, %cst_16 {dimension_numbers = #tpu.dot_dimension_numbers<[1], [0], [0], [1], [0, 0, 1, 1], [], []>} : vector<8x32xbf16>, vector<32x64xbf16>, vector<8x64xf32> -> vector<8x64xf32>
    %27 = vector.broadcast %18 : vector<1x64xf32> to vector<8x64xf32>
    %28 = arith.addf %26, %27 : vector<8x64xf32>
    %cst_17 = arith.constant 0.000000e+00 : f32
    %29 = vector.broadcast %cst_17 : f32 to vector<8x64xf32>
    %30 = arith.maximumf %28, %29 : vector<8x64xf32>
    %31 = arith.truncf %30 : vector<8x64xf32> to vector<8x64xbf16>
    %cst_18 = arith.constant dense<0.000000e+00> : vector<8x16xf32>
    %32 = tpu.matmul %31, %13, %cst_18 {dimension_numbers = #tpu.dot_dimension_numbers<[1], [0], [0], [1], [0, 0, 1, 1], [], []>} : vector<8x64xbf16>, vector<64x16xbf16>, vector<8x16xf32> -> vector<8x16xf32>
    %33 = vector.broadcast %23 : vector<1x16xf32> to vector<8x16xf32>
    %34 = arith.addf %32, %33 : vector<8x16xf32>
    %c0_19 = arith.constant 0 : index
    %c0_20 = arith.constant 0 : index
    %35 = vector.load %arg6[%c0_19, %c0_20] : memref<8x16xf32, #tpu.memory_space<vmem>>, vector<8x16xf32>
    tpu.vector_store %arg6[%c0_19, %c0_20], %34 {strides = array<i32>} : memref<8x16xf32, #tpu.memory_space<vmem>>, vector<8x16xf32>,
    return
  }
  func.func @transform_0(%arg0: i32) -> (i32, i32) {
    %c0_i32 = arith.constant 0 : i32
    %c0_i32_0 = arith.constant 0 : i32
    return %arg0, %c0_i32 : i32, i32
  }
  func.func @transform_1(%arg0: i32) -> (i32, i32) {
    %c0_i32 = arith.constant 0 : i32
    %c0_i32_0 = arith.constant 0 : i32
    %c0_i32_1 = arith.constant 0 : i32
    return %c0_i32, %c0_i32_0 : i32, i32
  }
  func.func @transform_2(%arg0: i32) -> (i32, i32) {
    %c0_i32 = arith.constant 0 : i32
    %c0_i32_0 = arith.constant 0 : i32
    %c0_i32_1 = arith.constant 0 : i32
    return %c0_i32, %c0_i32_0 : i32, i32
  }
  func.func @transform_3(%arg0: i32) -> (i32, i32) {
    %c0_i32 = arith.constant 0 : i32
    %c0_i32_0 = arith.constant 0 : i32
    %c0_i32_1 = arith.constant 0 : i32
    return %c0_i32, %c0_i32_0 : i32, i32
  }
  func.func @transform_4(%arg0: i32) -> (i32, i32) {
    %c0_i32 = arith.constant 0 : i32
    %c0_i32_0 = arith.constant 0 : i32
    %c0_i32_1 = arith.constant 0 : i32
    return %c0_i32, %c0_i32_0 : i32, i32
  }
  func.func @transform_5(%arg0: i32) -> (i32, i32) {
    %c0_i32 = arith.constant 0 : i32
    %c0_i32_0 = arith.constant 0 : i32
    return %arg0, %c0_i32 : i32, i32
  }
}

</mosaic_0001>

<llo_original>
// kernel: tpu_custom_call.1
$region0: #{tpu_custom_call.1}
  #allocation0 [shape = 'u32[]', space=smem, size = 0x4, offset = 0x4, fixed_abs, tag = 'smem constant byte address 0x4 - core index']
  #allocation1 [shape = 'u32[72,128]{1,0:T(1,128)}', space=vmem, size = 0x9000, scoped, tag = 'internal scratch']
  %s0 = inlined_call_operand.vmem [shape: f32[16,32], index: 0, kind: input, shape index: {}]
  %s1 = inlined_call_operand.hbm [shape: s8[32,64], index: 1, kind: input, shape index: {}]
  %s2 = inlined_call_operand.vmem [shape: f32[1,64], index: 2, kind: input, shape index: {}]
  %s3 = inlined_call_operand.vmem [shape: s8[64,16], index: 3, kind: input, shape index: {}]
  %s4 = inlined_call_operand.vmem [shape: f32[1,16], index: 4, kind: input, shape index: {}]
  %s5 = inlined_call_operand.hbm [shape: f32[16,16], index: 5, kind: output, shape index: {}]
  %s6 = sld [smem:[#allocation0]]
  $region57: #{tpu_custom_call.1} parent=0
    _
  %s8 = ssub.s32 1, %s6
  %s9 = scalar_select 0, %s8, %s6
  $region1: #{tpu_custom_call.1} parent=0
    #allocation2 [shape = 'u8[4096]{0}', space=vmem, size = 0x1000, scoped, tag = 'input window, operand 1, single buffered']
    #allocation3 [shape = 's32[2]{0}', space=sflag, size = 0x8, scoped, tag = 'scoped memory for tpu_custom_call.1']
    #allocation4 [shape = 's32[2]{0}', space=sflag, size = 0x8, scoped, tag = 'scoped memory for tpu_custom_call.1']
    #allocation5 [shape = 'u8[8192]{0}', space=vmem, size = 0x2000, scoped, tag = 'output window, operand 0']
    %10 = vsyncpa [#allocation3], 0
    %11 = vsyncpa [#allocation4], 0
    %s12 = scalar_lea.sflag [#allocation4], 1
    %13 = vsyncpa %s12, 0
    loop: start=0, step=1, limit=4
    $region2: #{tpu_custom_call.1} parent=1 // loop_pre_header
      _
    $region3: #{tpu_custom_call.1} parent=1 // loop_header
      %s15 = sphi 0, %s19
      %p16 = scmp.ge.s32.totalorder %s15, 4
      %s25 = sphi 0, %s27
      %s28 = sphi 0, %s25
      %s29 = sphi 0, %s28
      %s45 = sphi 0, %s29
      %s49 = sphi 0, %s49
      %s51 = sphi 0, %s49
      %s52 = sphi 0, %s51
      %s66 = sphi 0, %s52
      %s70 = sphi 0, %s70
      %s72 = sphi 0, %s70
      %s73 = sphi 0, %s72
      %s87 = sphi 0, %s73
      %s91 = sphi 0, %s91
      %s93 = sphi 0, %s91
      %s94 = sphi 0, %s93
      %s108 = sphi 0, %s94
      %s112 = sphi 0, %s112
      %s114 = sphi 0, %s112
      %s115 = sphi 0, %s114
      %s129 = sphi 0, %s115
      %s135 = sphi 0, %s137
      %s138 = sphi 0, %s135
      %s139 = sphi 0, %s138
      %s155 = sphi 0, %s139
    $region4: #{tpu_custom_call.1} parent=1 // loop_header_branch
      %18 = sbr.rel (%p16) target = $region8
    $region5: #{tpu_custom_call.1} parent=1 // loop_body
      %s20 = ssub.s32 %s15, 1
      %s21 = ssub.s32 %s15, 2
      %s22 = sadd.s32 %s15, 1
      %s23 = ssub.s32 %s15, %s22
      %p24 = scmp.eq.s32.totalorder %s23, 0
      %s26 = sadd.s32 %s25, 1
      %s27 = scalar_select %p24, %s25, %s26
      %p30 = pneg %p24
      %p31 = scmp.eq.s32.totalorder %s15, 1
      %p32 = por %p30, %p31
      %p33 = scmp.ne.s32.totalorder %s25, %s28
      %p34 = scmp.eq.s32.totalorder %s15, 0
      %p35 = por %p33, %p34
      %p36 = scmp.ne.s32.totalorder %s25, %s28
      %p37 = scmp.eq.s32.totalorder %s20, 1
      %p38 = por %p36, %p37
      %p39 = scmp.ne.s32.totalorder %s28, %s29
      %p40 = scmp.eq.s32.totalorder %s20, 0
      %p41 = por %p39, %p40
      %p42 = scmp.ne.s32.totalorder %s28, %s29
      %p43 = scmp.eq.s32.totalorder %s21, 1
      %p44 = por %p42, %p43
      %p46 = scmp.ne.s32.totalorder %s29, %s45
      %p47 = scmp.eq.s32.totalorder %s21, 0
      %p48 = por %p46, %p47
      %s50 = sadd.s32 %s49, 1
      %p53 = scmp.eq.s32.totalorder %s15, 1
      %p54 = scmp.ne.s32.totalorder %s49, %s51
      %p55 = scmp.eq.s32.totalorder %s15, 0
      %p56 = por %p54, %p55
      %p57 = scmp.ne.s32.totalorder %s49, %s51
      %p58 = scmp.eq.s32.totalorder %s20, 1
      %p59 = por %p57, %p58
      %p60 = scmp.ne.s32.totalorder %s51, %s52
      %p61 = scmp.eq.s32.totalorder %s20, 0
      %p62 = por %p60, %p61
      %p63 = scmp.ne.s32.totalorder %s51, %s52
      %p64 = scmp.eq.s32.totalorder %s21, 1
      %p65 = por %p63, %p64
      %p67 = scmp.ne.s32.totalorder %s52, %s66
      %p68 = scmp.eq.s32.totalorder %s21, 0
      %p69 = por %p67, %p68
      %s71 = sadd.s32 %s70, 1
      %p74 = scmp.eq.s32.totalorder %s15, 1
      %p75 = scmp.ne.s32.totalorder %s70, %s72
      %p76 = scmp.eq.s32.totalorder %s15, 0
      %p77 = por %p75, %p76
      %p78 = scmp.ne.s32.totalorder %s70, %s72
      %p79 = scmp.eq.s32.totalorder %s20, 1
      %p80 = por %p78, %p79
      %p81 = scmp.ne.s32.totalorder %s72, %s73
      %p82 = scmp.eq.s32.totalorder %s20, 0
      %p83 = por %p81, %p82
      %p84 = scmp.ne.s32.totalorder %s72, %s73
      %p85 = scmp.eq.s32.totalorder %s21, 1
      %p86 = por %p84, %p85
      %p88 = scmp.ne.s32.totalorder %s73, %s87
      %p89 = scmp.eq.s32.totalorder %s21, 0
      %p90 = por %p88, %p89
      %s92 = sadd.s32 %s91, 1
      %p95 = scmp.eq.s32.totalorder %s15, 1
      %p96 = scmp.ne.s32.totalorder %s91, %s93
      %p97 = scmp.eq.s32.totalorder %s15, 0
      %p98 = por %p96, %p97
      %p99 = scmp.ne.s32.totalorder %s91, %s93
      %p100 = scmp.eq.s32.totalorder %s20, 1
      %p101 = por %p99, %p100
      %p102 = scmp.ne.s32.totalorder %s93, %s94
      %p103 = scmp.eq.s32.totalorder %s20, 0
      %p104 = por %p102, %p103
      %p105 = scmp.ne.s32.totalorder %s93, %s94
      %p106 = scmp.eq.s32.totalorder %s21, 1
      %p107 = por %p105, %p106
      %p109 = scmp.ne.s32.totalorder %s94, %s108
      %p110 = scmp.eq.s32.totalorder %s21, 0
      %p111 = por %p109, %p110
      %s113 = sadd.s32 %s112, 1
      %p116 = scmp.eq.s32.totalorder %s15, 1
      %p117 = scmp.ne.s32.totalorder %s112, %s114
      %p118 = scmp.eq.s32.totalorder %s15, 0
      %p119 = por %p117, %p118
      %p120 = scmp.ne.s32.totalorder %s112, %s114
      %p121 = scmp.eq.s32.totalorder %s20, 1
      %p122 = por %p120, %p121
      %p123 = scmp.ne.s32.totalorder %s114, %s115
      %p124 = scmp.eq.s32.totalorder %s20, 0
      %p125 = por %p123, %p124
      %p126 = scmp.ne.s32.totalorder %s114, %s115
      %p127 = scmp.eq.s32.totalorder %s21, 1
      %p128 = por %p126, %p127
      %p130 = scmp.ne.s32.totalorder %s115, %s129
      %p131 = scmp.eq.s32.totalorder %s21, 0
      %p132 = por %p130, %p131
      %s133 = ssub.s32 %s15, %s22
      %p134 = scmp.eq.s32.totalorder %s133, 0
      %s136 = sadd.s32 %s135, 1
      %s137 = scalar_select %p134, %s135, %s136
      %p140 = pneg %p134
      %p141 = scmp.eq.s32.totalorder %s15, 1
      %p142 = por %p140, %p141
      %p143 = scmp.ne.s32.totalorder %s135, %s138
      %p144 = scmp.eq.s32.totalorder %s15, 0
      %p145 = por %p143, %p144
      %p146 = scmp.ne.s32.totalorder %s135, %s138
      %p147 = scmp.eq.s32.totalorder %s20, 1
      %p148 = por %p146, %p147
      %p149 = scmp.ne.s32.totalorder %s138, %s139
      %p150 = scmp.eq.s32.totalorder %s20, 0
      %p151 = por %p149, %p150
      %p152 = scmp.ne.s32.totalorder %s138, %s139
      %p153 = scmp.eq.s32.totalorder %s21, 1
      %p154 = por %p152, %p153
      %p156 = scmp.ne.s32.totalorder %s139, %s155
      %p157 = scmp.eq.s32.totalorder %s21, 0
      %p158 = por %p156, %p157
      %p159 = scmp.le.s32.totalorder 1, %s15
      %p160 = scmp.lt.s32.totalorder %s15, 3
      %p161 = pnand %p159, %p160
      %p162 = pneg %p161
      // Predicated region
      $region9: #{tpu_custom_call.1} parent=5 // pred_check
        _
      $region10: #{tpu_custom_call.1} parent=5 // pred_check_branch
        %164 = sbr.rel (%p161) target = $region12
      $region11: #{tpu_custom_call.1} parent=5 // pred_region
        %s165 = ssub.s32 %s15, 1
        // Predicated region
        $region13: #{tpu_custom_call.1} parent=11 // pred_check
          %p166 = pneg %p62
        $region14: #{tpu_custom_call.1} parent=11 // pred_check_branch
          %168 = sbr.rel (%p166) target = $region16
        $region15: #{tpu_custom_call.1} parent=11 // pred_region
          %170 = vsyncadd [#allocation3], 0
          %s172 = sshll.u32 %s1, 4
          %s173 = int_to_ptr.hbm [resolvable:$true] %s172
          %s174 = sshll.u32 [#allocation2], 4
          %s175 = int_to_ptr.vmem [resolvable:$true] %s174
          %177 = dma.hbm_to_vmem [thread:$0]  %s173, 128, %s175, [#allocation3]
        $region16: #{tpu_custom_call.1} parent=11 // pred_fallthru
          _
        // Predicated region
        $region17: #{tpu_custom_call.1} parent=11 // pred_check
          %p178 = pneg %p83
        $region18: #{tpu_custom_call.1} parent=11 // pred_check_branch
          %180 = sbr.rel (%p178) target = $region20
        $region19: #{tpu_custom_call.1} parent=11 // pred_region
          _
        $region20: #{tpu_custom_call.1} parent=11 // pred_fallthru
          _
        // Predicated region
        $region21: #{tpu_custom_call.1} parent=11 // pred_check
          %p181 = pneg %p104
        $region22: #{tpu_custom_call.1} parent=11 // pred_check_branch
          %183 = sbr.rel (%p181) target = $region24
        $region23: #{tpu_custom_call.1} parent=11 // pred_region
          _
        $region24: #{tpu_custom_call.1} parent=11 // pred_fallthru
          _
        // Predicated region
        $region25: #{tpu_custom_call.1} parent=11 // pred_check
          %p184 = pneg %p125
        $region26: #{tpu_custom_call.1} parent=11 // pred_check_branch
          %186 = sbr.rel (%p184) target = $region28
        $region27: #{tpu_custom_call.1} parent=11 // pred_region
          _
        $region28: #{tpu_custom_call.1} parent=11 // pred_fallthru
          _
      $region12: #{tpu_custom_call.1} parent=5 // pred_fallthru
        _
      %p187 = scmp.lt.s32.totalorder %s15, 2
      // Predicated region
      $region29: #{tpu_custom_call.1} parent=5 // pred_check
        %p188 = pneg %p187
      $region30: #{tpu_custom_call.1} parent=5 // pred_check_branch
        %190 = sbr.rel (%p188) target = $region32
      $region31: #{tpu_custom_call.1} parent=5 // pred_region
        // Predicated region
        $region33: #{tpu_custom_call.1} parent=31 // pred_check
          %p191 = pneg %p35
        $region34: #{tpu_custom_call.1} parent=31 // pred_check_branch
          %193 = sbr.rel (%p191) target = $region36
        $region35: #{tpu_custom_call.1} parent=31 // pred_region
          %p194 = scmp.lt.s32.totalorder %s15, 1
          %s195 = scalar_select %p194, %s15, 1
          %s196 = smul.addr %s195, 8
          %s197 = scalar_lea.vmem %s0, %s196
        $region36: #{tpu_custom_call.1} parent=31 // pred_fallthru
          _
      $region32: #{tpu_custom_call.1} parent=5 // pred_fallthru
        _
      %p198 = scmp.le.s32.totalorder 1, %s15
      %p199 = scmp.lt.s32.totalorder %s15, 3
      %p200 = pnand %p198, %p199
      %p201 = pneg %p200
      // Predicated region
      $region37: #{tpu_custom_call.1} parent=5 // pred_check
        _
      $region38: #{tpu_custom_call.1} parent=5 // pred_check_branch
        %203 = sbr.rel (%p200) target = $region40
      $region39: #{tpu_custom_call.1} parent=5 // pred_region
        %s204 = ssub.s32 %s15, 1
        // Predicated region
        $region41: #{tpu_custom_call.1} parent=39 // pred_check
          %p205 = pneg %p62
        $region42: #{tpu_custom_call.1} parent=39 // pred_check_branch
          %207 = sbr.rel (%p205) target = $region44
        $region43: #{tpu_custom_call.1} parent=39 // pred_region
          %209 = dma.done [#allocation3], 128
        $region44: #{tpu_custom_call.1} parent=39 // pred_fallthru
          _
        %p210 = scmp.lt.s32.totalorder %s20, 1
        %s211 = scalar_select %p210, %s20, 1
        %s212 = smul.addr %s211, 8
        %s213 = scalar_lea.vmem %s0, %s212
        %p214 = pneg %p41
        %p215 = pneg %p38
        %p216 = pneg %p62
        %p217 = pneg %p59
        %p218 = pneg %p83
        %p219 = pneg %p80
        %p220 = pneg %p104
        %p221 = pneg %p101
        %p222 = pneg %p125
        %p223 = pneg %p122
        %p224 = pneg %p151
        %p225 = pneg %p148
        %s226 = sand.u32 %s138, 1
        %s227 = scalar_lea.sflag [#allocation4], %s226
        %s228 = sand.u32 %s138, 1
        %s229 = smul.addr %s228, 8
        %s230 = scalar_lea.vmem [#allocation5], %s229
        %p231 = scmp.lt.s32.totalorder %s20, 1
        %s232 = scalar_select %p231, %s20, 1
        %s233 = smul.addr %s232, 8
        %s234 = scalar_lea.vmem %s0, %s233
        %v236 = vld [vmem:[#allocation2] sm:$0xff]
        %v237 = vunpack.c.0.s8 %v236
        %v238 = vunpack.c.1.s8 %v236
        %v239 = vunpack.c.2.s8 %v236
        %v240 = vunpack.c.3.s8 %v236
        %v241 = vcvt.s32.f32 %v237
        %v242 = vcvt.s32.f32 %v238
        %v243 = vcvt.s32.f32 %v239
        %v244 = vcvt.s32.f32 %v240
        %v245 = vadd.f32 %v241, 1.0
        %v246 = vadd.f32 %v242, 1.0
        %v247 = vadd.f32 %v243, 1.0
        %v248 = vadd.f32 %v244, 1.0
        %v249 = vmul.f32 %v245, 0.5
        %v250 = vmul.f32 %v246, 0.5
        %v251 = vmul.f32 %v247, 0.5
        %v252 = vmul.f32 %v248, 0.5
        %v253 = vpack.c.bf16 %v250, %v249
        %v254 = vpack.c.bf16 %v252, %v251
        %v255 = vld [vmem:[%s3] sm:$0xff]
        %v256 = vld [vmem:[%s3 + $0x8] sm:$0xff]
        %v257 = vunpack.c.0.s8 %v255
        %v258 = vunpack.c.1.s8 %v255
        %v259 = vunpack.c.2.s8 %v255
        %v260 = vunpack.c.3.s8 %v255
        %v261 = vunpack.c.0.s8 %v256
        %v262 = vunpack.c.1.s8 %v256
        %v263 = vunpack.c.2.s8 %v256
        %v264 = vunpack.c.3.s8 %v256
        %v265 = vcvt.s32.f32 %v257
        %v266 = vcvt.s32.f32 %v258
        %v267 = vcvt.s32.f32 %v259
        %v268 = vcvt.s32.f32 %v260
        %v269 = vcvt.s32.f32 %v261
        %v270 = vcvt.s32.f32 %v262
        %v271 = vcvt.s32.f32 %v263
        %v272 = vcvt.s32.f32 %v264
        %v273 = vadd.f32 %v265, 1.0
        %v274 = vadd.f32 %v266, 1.0
        %v275 = vadd.f32 %v267, 1.0
        %v276 = vadd.f32 %v268, 1.0
        %v277 = vadd.f32 %v269, 1.0
        %v278 = vadd.f32 %v270, 1.0
        %v279 = vadd.f32 %v271, 1.0
        %v280 = vadd.f32 %v272, 1.0
        %v281 = vmul.f32 %v273, 0.5
        %v282 = vmul.f32 %v274, 0.5
        %v283 = vmul.f32 %v275, 0.5
        %v284 = vmul.f32 %v276, 0.5
        %v285 = vmul.f32 %v277, 0.5
        %v286 = vmul.f32 %v278, 0.5
        %v287 = vmul.f32 %v279, 0.5
        %v288 = vmul.f32 %v280, 0.5
        %v289 = vpack.c.bf16 %v282, %v281
        %v290 = vpack.c.bf16 %v284, %v283
        %v291 = vpack.c.bf16 %v286, %v285
        %v292 = vpack.c.bf16 %v288, %v287
        %v293 = vld [vmem:[%s2] sm:$0x1]
        %v294 = vadd.f32 %v293, 1.0
        %v295 = vmul.f32 %v294, 0.5
        %v296 = vld [vmem:[%s4] sm:$0x1]
        %v297 = vadd.f32 %v296, 1.0
        %v298 = vmul.f32 %v297, 0.5
        %v299 = vld [vmem:[%s234] sm:$0xff]
        %v300 = vpack.c.bf16 %v299, %v299
        %v302 = vperm.slane %v295, 0
        %vm304 = vcmask 261120
        %v306 = vsel %vm304, %v300, 0
        %308 = vmatpush.bf16.msra.mxu0 0
        %309 = vmatpush.bf16.msra.mxu0 0
        %310 = vmatpush.bf16.msra.mxu0 0
        %311 = vmatpush.bf16.msra.mxu0 0
        %312 = vmatpush.bf16.msra.mxu0 0
        %313 = vmatpush.bf16.msra.mxu0 0
        %314 = vmatpush.bf16.msra.mxu0 %v254
        %315 = vmatpush.bf16.msra.mxu0 %v253
        %316 = vmatmul.bf16.gmra.mxu0 %v306
        %v317 = vpop.f32.mrf.mxu0
        %v318 = vadd.f32 %v302, %v317
        %v319 = vpop.f32.mrf.mxu0
        %320 = vdwg.mxu0
        %v321 = vmax.f32 %v318, 0.0
        %v322 = vpack.c.bf16 %v321, %v321
        %v324 = vperm.slane %v298, 0
        %vm326 = vcmask 523264
        %v328 = vsel %vm326, %v322, 0
        %330 = vmatpush.bf16.msra.mxu0 0
        %331 = vmatpush.bf16.msra.mxu0 0
        %332 = vmatpush.bf16.msra.mxu0 0
        %333 = vmatpush.bf16.msra.mxu0 0
        %334 = vmatpush.bf16.msra.mxu0 %v292
        %335 = vmatpush.bf16.msra.mxu0 %v291
        %336 = vmatpush.bf16.msra.mxu0 %v290
        %337 = vmatpush.bf16.msra.mxu0 %v289
        %338 = vmatmul.bf16.gmra.mxu0 %v328
        %v339 = vpop.f32.mrf.mxu0
        %v340 = vadd.f32 %v324, %v339
        %v341 = vpop.f32.mrf.mxu0
        %342 = vdwg.mxu0
        %vm343 = vcmask 130048
        %344 = vst.msk [vmem:[%s230] sm:$0xff] %vm343, %v340
        %s345 = sand.u32 %s138, 1
        %s346 = scalar_lea.sflag [#allocation4], %s345
        %s347 = sand.u32 %s138, 1
        %s348 = smul.addr %s347, 8
        %s349 = scalar_lea.vmem [#allocation5], %s348
        // Predicated region
        $region45: #{tpu_custom_call.1} parent=39 // pred_check
          %p350 = pneg %p148
        $region46: #{tpu_custom_call.1} parent=39 // pred_check_branch
          %352 = sbr.rel (%p350) target = $region48
        $region47: #{tpu_custom_call.1} parent=39 // pred_region
          %354 = vsyncadd %s346, 0
          %s355 = smul.addr %s20, 8
          %s356 = scalar_lea.hbm %s5, %s355
          %s358 = sshll.u32 %s349, 4
          %s359 = int_to_ptr.vmem [resolvable:$true] %s358
          %s360 = sshll.u32 %s356, 4
          %s361 = int_to_ptr.hbm [resolvable:$true] %s360
          %363 = dma.vmem_to_hbm [thread:$0]  %s359, 128, %s361, %s346
        $region48: #{tpu_custom_call.1} parent=39 // pred_fallthru
          _
      $region40: #{tpu_custom_call.1} parent=5 // pred_fallthru
        _
      %p364 = scmp.le.s32.totalorder 2, %s15
      // Predicated region
      $region49: #{tpu_custom_call.1} parent=5 // pred_check
        %p365 = pneg %p364
      $region50: #{tpu_custom_call.1} parent=5 // pred_check_branch
        %367 = sbr.rel (%p365) target = $region52
      $region51: #{tpu_custom_call.1} parent=5 // pred_region
        %s368 = ssub.s32 %s15, 2
        // Predicated region
        $region53: #{tpu_custom_call.1} parent=51 // pred_check
          %p369 = pneg %p154
        $region54: #{tpu_custom_call.1} parent=51 // pred_check_branch
          %371 = sbr.rel (%p369) target = $region56
        $region55: #{tpu_custom_call.1} parent=51 // pred_region
          %s372 = sand.u32 %s139, 1
          %s373 = scalar_lea.sflag [#allocation4], %s372
          %s374 = sand.u32 %s139, 1
          %s375 = smul.addr %s374, 8
          %s376 = scalar_lea.vmem [#allocation5], %s375
          %378 = dma.done %s373, 128
        $region56: #{tpu_custom_call.1} parent=51 // pred_fallthru
          _
      $region52: #{tpu_custom_call.1} parent=5 // pred_fallthru
        _
    $region6: #{tpu_custom_call.1} parent=1 // loop_footer
      %s19 = sadd.s32 1, %s15
    $region7: #{tpu_custom_call.1} parent=1 // loop_footer_branch
      %14 = sbr.rel target = $region3
    $region8: #{tpu_custom_call.1} parent=1 // loop_exit
      _
    %379 = vsyncpa [#allocation3], 1
    %s380 = scalar_lea.sflag [#allocation3], 1
    %381 = vsyncpa %s380, 1
    %382 = vsyncpa [#allocation4], 1
    %s383 = scalar_lea.sflag [#allocation4], 1
    %384 = vsyncpa %s383, 1

</llo_original>
